<compile_context>
chip_gen: v7x
topology: tpu7x:2x2x1
jax: 0.10.0
libtpu: 0.0.40
codegen_flags: <defaults>
</compile_context>

<pallas_src>
import functools

import jax
import jax.numpy as jnp
from jax import lax
from jax.experimental import pallas as pl
from jax.experimental.pallas import tpu as pltpu


def _vq_kernel(z_ref, e_ref, hesq_ref, q_ref, idx_ref, sse_ref, cnt_ref,
               sse_acc, cnt_acc, *, hw_valid, tile_n, needs_mask, dist_dtype):
    """Quantize one (D, tile_n) lane-dense token slab of one batch element.

    z_ref    : (D, tN)  f32 input tokens (token axis on the 128-wide lane dim)
    e_ref    : (K, D)   f32 codebook (constant block, resident every step)
    hesq_ref : (K, 1)   f32 0.5 * |e_k|^2 (hoisted to the wrapper)
    q_ref    : (D, tN)  f32 quantized tokens
    idx_ref  : (1, tN)  i32 argmin indices (lane-dense row)
    sse_ref  : (1, 1)   f32 per-batch sum((q - z)^2)   (written at last hw step)
    cnt_ref  : (K, 1)   f32 per-batch per-code counts  (written at last hw step)
    sse_acc  : (1, L)   f32 VMEM scratch, lane-folded sse partials
    cnt_acc  : (K, L)   f32 VMEM scratch, lane-folded count partials
    """
    i = pl.program_id(1)
    n_i = pl.num_programs(1)

    @pl.when(i == 0)
    def _init():
        sse_acc[...] = jnp.zeros_like(sse_acc)
        cnt_acc[...] = jnp.zeros_like(cnt_acc)

    z = z_ref[...]                       # (D, tN)
    e = e_ref[...]                       # (K, D)
    half_e_sq = hesq_ref[...]            # (K, 1)

    # argmin_k |z - e_k|^2  ==  argmax_k (<e_k, z> - 0.5*|e_k|^2); the per-token
    # |z|^2 term is constant over k and dropped (saves a sublane reduce and a full
    # VPU pass over the (K, tN) intermediate).
    cross = lax.dot_general(e.astype(dist_dtype), z.astype(dist_dtype),
                            (((1,), (0,)), ((), ())),
                            preferred_element_type=jnp.float32)        # (K, tN)
    score = cross - half_e_sq                                          # (K, tN)

    n_codes = score.shape[0]
    k_ids = lax.broadcasted_iota(jnp.int32, score.shape, 0)            # (K, tN)
    s_max = jnp.max(score, axis=0, keepdims=True)                      # (1, tN)
    # first-occurrence argmax (== torch.argmin's first-occurrence tie rule)
    idx = jnp.min(jnp.where(score == s_max, k_ids, n_codes),
                  axis=0, keepdims=True)                               # (1, tN) i32

    onehot = (k_ids == idx).astype(jnp.float32)                        # (K, tN)
    # q^T = e^T @ onehot -> (D, tN): exact f32 codeword lookup via one-hot matmul.
    q = lax.dot_general(e, onehot, (((0,), (0,)), ((), ())),
                        preferred_element_type=jnp.float32)            # (D, tN)

    q_ref[...] = q.astype(q_ref.dtype)
    idx_ref[...] = idx

    # --- fused loss / perplexity statistics, VPU-only per step -------------------
    diff = q - z
    sq_row = jnp.sum(diff * diff, axis=0, keepdims=True)               # (1, tN)

    if needs_mask:
        # last tile of a padded HW axis: drop padded tokens from the statistics
        valid = hw_valid - i * tile_n
        lane_pos = lax.broadcasted_iota(jnp.int32, (1, tile_n), 1)
        m = lane_pos < valid
        sq_row = jnp.where(m, sq_row, 0.0)
        onehot = onehot * m.astype(jnp.float32)

    lane = sse_acc.shape[1]
    n_folds = sq_row.shape[1] // lane
    # fold lanes with pure VPU adds; XLU is left to the argmin's max-reduce.
    sq_fold = sq_row[:, 0:lane]
    cnt_fold = onehot[:, 0:lane]
    for j in range(1, n_folds):
        sq_fold = sq_fold + sq_row[:, j * lane:(j + 1) * lane]
        cnt_fold = cnt_fold + onehot[:, j * lane:(j + 1) * lane]
    sse_acc[...] += sq_fold
    cnt_acc[...] += cnt_fold

    @pl.when(i == n_i - 1)
    def _finalize():
        # single cross-lane reduce per batch element
        sse_ref[...] = jnp.sum(sse_acc[...], axis=1, keepdims=True)
        cnt_ref[...] = jnp.sum(cnt_acc[...], axis=1, keepdims=True)


def _vmem_limit_bytes():
    """Per-generation scoped-VMEM limit: ~48 MiB on v7x, ~100 MiB on v5e/v6e."""
    cap = 64 * 1024 * 1024  # safe default (v7x physical per-core)
    try:
        cap = int(getattr(pltpu.get_tpu_info(), "vmem_capacity_bytes", cap))
    except Exception:
        pass
    return min(cap - (16 << 20), 100 << 20)


def _choose_tile(hw, n_codes, dim, vmem_limit, max_tile=2048):
    """Largest lane-aligned token tile that fits the VMEM budget.

    Returns (tile_n, hw_padded); hw_padded > hw means the kernel masks the tail.
    """
    # rough live f32 bytes per token: double-buffered z-in + q/idx-out, plus the
    # (K, tN) temporaries (cross/score/k_ids/onehot) and the (D, tN) diff.
    per_tok = 4 * (4 * (dim + 1) + 4 * n_codes + 2 * dim)
    fixed = 4 * (n_codes * (dim + 1) + (n_codes + 1) * 128)
    budget = max(vmem_limit // 2 - fixed, per_tok * 128)
    cap = max(128, min(max_tile, (budget // per_tok) // 128 * 128))
    if hw <= cap:
        return hw, hw                                   # one tile, no padding
    for t in range(cap, 127, -128):                     # 128-multiple divisor
        if hw % t == 0:
            return t, hw
    hw_pad = -(-hw // cap) * cap                        # pad + mask the tail
    return cap, hw_pad


def _distance_matmul_dtype(n_codes, dim):
    # bf16 distance matmul keeps production codebooks (K>=256, D>=32) on the HBM
    # roofline (f32 matmul is multi-pass on the MXU); only distance ORDERING is
    # needed so the precision loss is fine there. At tiny K/D the bf16 tie band is
    # wide relative to the codeword gaps, so stay f32 for exact argmin parity.
    return jnp.bfloat16 if (n_codes >= 256 and dim >= 32) else jnp.float32


def _vq_pallas(z, codebook, *, max_tile=2048):
    """z: (B, D, HW) channel-major tokens; codebook: (K, D).

    Returns (q (B,D,HW) f32, idx (B,1,HW) i32, sse (B,1,1) f32, counts (B,K,1) f32).
    """
    B, D, HW = z.shape
    K, D2 = codebook.shape
    assert D == D2

    vmem_limit = _vmem_limit_bytes()
    tile_n, hw_pad = _choose_tile(HW, K, D, vmem_limit, max_tile)
    if hw_pad != HW:
        z = jnp.pad(z, ((0, 0), (0, 0), (0, hw_pad - HW)))
    grid = (B, hw_pad // tile_n)
    lane = 128 if tile_n % 128 == 0 else tile_n

    # hoisted once per call; pre-halved so the kernel never multiplies by 2
    half_e_sq = 0.5 * jnp.sum(codebook * codebook, axis=1, keepdims=True)   # (K, 1)

    kernel = functools.partial(
        _vq_kernel, hw_valid=HW, tile_n=tile_n,
        needs_mask=(hw_pad != HW), dist_dtype=_distance_matmul_dtype(K, D))

    # NOTE(perf): the constant codebook / half_e_sq blocks could use
    # pipeline_mode=pl.Buffered(1) to halve their VMEM footprint; left at the
    # default double-buffering for broad jax-version compatibility (footprint is
    # already budgeted for in _choose_tile). q could also be emitted as bf16 to
    # cut store traffic if the caller tolerates it.
    q, idx, sse, counts = pl.pallas_call(
        kernel,
        out_shape=(
            jax.ShapeDtypeStruct((B, D, hw_pad), jnp.float32),  # quantized tokens
            jax.ShapeDtypeStruct((B, 1, hw_pad), jnp.int32),    # indices, lane-dense
            jax.ShapeDtypeStruct((B, 1, 1), jnp.float32),       # per-batch sum((q-z)^2)
            jax.ShapeDtypeStruct((B, K, 1), jnp.float32),       # per-batch code counts
        ),
        grid_spec=pltpu.PrefetchScalarGridSpec(
            num_scalar_prefetch=0,
            grid=grid,
            in_specs=[
                pl.BlockSpec((None, D, tile_n), lambda b, i: (b, 0, i)),
                pl.BlockSpec((K, D), lambda b, i: (0, 0)),     # codebook resident
                pl.BlockSpec((K, 1), lambda b, i: (0, 0)),     # 0.5*|e|^2 resident
            ],
            out_specs=[
                pl.BlockSpec((None, D, tile_n), lambda b, i: (b, 0, i)),
                pl.BlockSpec((None, 1, tile_n), lambda b, i: (b, 0, i)),
                pl.BlockSpec((None, 1, 1), lambda b, i: (b, 0, 0)),   # revisited acc
                pl.BlockSpec((None, K, 1), lambda b, i: (b, 0, 0)),   # revisited acc
            ],
            scratch_shapes=[
                pltpu.VMEM((1, lane), jnp.float32),   # lane-folded sse partials
                pltpu.VMEM((K, lane), jnp.float32),   # lane-folded count partials
            ],
        ),
        # batch axis -> "parallel" so v7x's two TensorCores each take a slice of
        # the batch (per-batch sse/cnt output blocks keep them independent);
        # the hw-tile axis is a reduction for sse/cnt -> "arbitrary".
        compiler_params=pltpu.CompilerParams(
            dimension_semantics=("parallel", "arbitrary"),
            vmem_limit_bytes=vmem_limit),
    )(z, codebook, half_e_sq)

    if hw_pad != HW:
        q = q[:, :, :HW]
        idx = idx[:, :, :HW]
    return q, idx, sse, counts


class OldVectorQuantizerPallas:
    """JAX/Pallas port of old_VectorQuantizer.forward (forward-value semantics)."""

    def __init__(self, num_embeddings, embedding_dim, commitment_cost, key):
        self.num_embeddings = num_embeddings
        self.embedding_dim = embedding_dim
        self.commitment_cost = commitment_cost
        rng = 1.0 / num_embeddings
        # deterministic init, matches uniform_(-1/K, 1/K)
        self.weight = jax.random.uniform(
            key, (num_embeddings, embedding_dim),
            dtype=jnp.float32, minval=-rng, maxval=rng)

    @functools.partial(jax.jit, static_argnums=0)
    def forward(self, inputs_nchw):
        B, C, H, W = inputs_nchw.shape
        assert C == self.embedding_dim
        N = B * H * W
        HW = H * W

        # metadata-only reshape NCHW -> (B, D, HW): no transpose, no extra HBM pass.
        # Token index b*HW + h*W + w matches the NHWC flatten of the torch module.
        z = inputs_nchw.reshape(B, C, HW)

        q, idx, sse_b, cnt_b = _vq_pallas(z, self.weight)

        # back to NCHW for free; the straight-through estimator
        # inputs + (quantized - inputs).detach() has forward value == quantized.
        quantized = q.reshape(B, C, H, W)

        # fused loss: e_latent_loss == q_latent_loss == MSE(quantized, inputs)
        sse = jnp.sum(sse_b)
        mse = sse / (N * C)
        loss = mse + self.commitment_cost * mse

        # per-batch f32 counts stay exact up to 2^24 tokens per batch; wrapper sum
        # across batches is tiny. (Use i32 accumulation for extreme N.)
        counts = jnp.sum(cnt_b[:, :, 0], axis=0)                       # (K,)
        avg_probs = counts / N
        perplexity = jnp.exp(-jnp.sum(avg_probs * jnp.log(avg_probs + 1e-10)))

        encoding_indices = jnp.reshape(idx, (N, 1))
        # dense one-hot kept only for API parity with the torch module; the kernel
        # never writes an (N, K) f32 tensor to HBM.
        encodings = jax.nn.one_hot(jnp.reshape(idx, (N,)), self.num_embeddings,
                                   dtype=jnp.float32)

        return loss, quantized, perplexity, encodings, encoding_indices


def _reference_forward(inputs_nchw, weight, commitment_cost):
    """Pure-JAX reference mirroring the PyTorch forward (for validation)."""
    B, C, H, W = inputs_nchw.shape
    inputs = jnp.transpose(inputs_nchw, (0, 2, 3, 1))
    flat = inputs.reshape(-1, C)
    d = (jnp.sum(flat ** 2, axis=1, keepdims=True)
         + jnp.sum(weight ** 2, axis=1)
         - 2.0 * flat @ weight.T)
    idx = jnp.argmin(d, axis=1)
    enc = jax.nn.one_hot(idx, weight.shape[0], dtype=jnp.float32)
    q = (enc @ weight).reshape(inputs.shape)
    mse = jnp.mean((q - inputs) ** 2)
    loss = mse + commitment_cost * mse
    avg_probs = jnp.mean(enc, axis=0)
    perplexity = jnp.exp(-jnp.sum(avg_probs * jnp.log(avg_probs + 1e-10)))
    return loss, jnp.transpose(q, (0, 3, 1, 2)), perplexity, enc, idx


if __name__ == "__main__":
    key = jax.random.PRNGKey(0)
    k_w, k_x = jax.random.split(key)

    num_embeddings = 16
    embedding_dim = 4
    commitment_cost = 0.25
    B, C, H, W = 2, embedding_dim, 16, 16   # N = B*H*W = 512 tokens

    vq = OldVectorQuantizerPallas(num_embeddings, embedding_dim,
                                  commitment_cost, k_w)
    x = jax.random.normal(k_x, (B, C, H, W), dtype=jnp.float32)

    loss, quantized, perplexity, encodings, encoding_indices = vq.forward(x)
    jax.block_until_ready((loss, quantized, perplexity, encodings,
                           encoding_indices))

    # ---- validation against a plain-JAX mirror of the torch forward ----
    ref_loss, ref_q, ref_perp, ref_enc, ref_idx = _reference_forward(
        x, vq.weight, commitment_cost)

    kern_idx = encoding_indices[:, 0]

    # tie-aware index check: disagreement is allowed only where the two candidate
    # codewords are numerically equidistant (f32 noise on near-ties).
    flat = jnp.transpose(x, (0, 2, 3, 1)).reshape(-1, embedding_dim)
    d_ref = (jnp.sum(flat ** 2, axis=1, keepdims=True)
             + jnp.sum(vq.weight ** 2, axis=1)
             - 2.0 * flat @ vq.weight.T)
    d_kern = jnp.take_along_axis(d_ref, kern_idx[:, None], axis=1)[:, 0]
    d_best = jnp.take_along_axis(d_ref, ref_idx[:, None], axis=1)[:, 0]
    agree = kern_idx == ref_idx
    assert bool(jnp.all(agree | (jnp.abs(d_kern - d_best) < 1e-4)))

    # quantized values must match the reference wherever the index choice agrees
    tok_agree = agree.reshape(B, H, W)[:, None, :, :]
    assert bool(jnp.all(jnp.where(tok_agree,
                                  jnp.abs(quantized - ref_q) < 1e-5, True)))

    assert jnp.allclose(loss, ref_loss, atol=1e-5, rtol=1e-5)
    assert jnp.allclose(perplexity, ref_perp, rtol=5e-2)

    # API-parity outputs: encodings is the one-hot of the returned indices
    assert encodings.shape == (B * H * W, num_embeddings)
    assert jnp.array_equal(
        encodings, jax.nn.one_hot(kern_idx, num_embeddings, dtype=jnp.float32))
    assert encoding_indices.shape == (B * H * W, 1)

    print("KERNEL_OK")
</pallas_src>

<mosaic_0001>
module attributes {stable_mosaic.version = 11 : i64} {
  func.func @_vq_kernel(%arg0: i32, %arg1: i32, %arg2: memref<1x4x256xf32, #tpu.memory_space<vmem>>, %arg3: memref<16x4xf32, #tpu.memory_space<vmem>>, %arg4: memref<16x1xf32, #tpu.memory_space<vmem>>, %arg5: memref<1x4x256xf32, #tpu.memory_space<vmem>>, %arg6: memref<1x1x256xi32, #tpu.memory_space<vmem>>, %arg7: memref<1x1x1xf32, #tpu.memory_space<vmem>>, %arg8: memref<1x16x1xf32, #tpu.memory_space<vmem>>, %arg9: memref<1x128xf32, #tpu.memory_space<vmem>>, %arg10: memref<16x128xf32, #tpu.memory_space<vmem>>) attributes {dimension_semantics = [#tpu.dimension_semantics<parallel>, #tpu.dimension_semantics<arbitrary>], iteration_bounds = array<i64: 2, 1>, scalar_prefetch = 0 : i64, scratch_operands = 2 : i64, tpu.core_type = #tpu.core_type<tc>, window_params = [{transform_indices = @transform_0, window_bounds = array<i64: 1, 4, 256>}, {pipeline_mode = #tpu.pipeline_mode<synchronous>, transform_indices = @transform_1, window_bounds = array<i64: 16, 4>}, {pipeline_mode = #tpu.pipeline_mode<synchronous>, transform_indices = @transform_2, window_bounds = array<i64: 16, 1>}, {transform_indices = @transform_3, window_bounds = array<i64: 1, 4, 256>}, {transform_indices = @transform_4, window_bounds = array<i64: 1, 1, 256>}, {transform_indices = @transform_5, window_bounds = array<i64: 1, 1, 1>}, {transform_indices = @transform_6, window_bounds = array<i64: 1, 16, 1>}]} {
    %c0_i32 = arith.constant 0 : i32
    %0 = arith.cmpi eq, %arg1, %c0_i32 : i32
    %1 = arith.extui %0 : i1 to i32
    %c0_i32_0 = arith.constant 0 : i32
    %2 = arith.cmpi ne, %1, %c0_i32_0 : i32
    scf.if %2 {
      %cst_27 = arith.constant 0.000000e+00 : f32
      %49 = vector.broadcast %cst_27 : f32 to vector<1x128xf32>
      %c0_28 = arith.constant 0 : index
      %c0_29 = arith.constant 0 : index
      %50 = vector.load %arg9[%c0_28, %c0_29] : memref<1x128xf32, #tpu.memory_space<vmem>>, vector<1x128xf32>
      tpu.vector_store %arg9[%c0_28, %c0_29], %49 {strides = array<i32>} : memref<1x128xf32, #tpu.memory_space<vmem>>, vector<1x128xf32>,
      %cst_30 = arith.constant 0.000000e+00 : f32
      %51 = vector.broadcast %cst_30 : f32 to vector<16x128xf32>
      %c0_31 = arith.constant 0 : index
      %c0_32 = arith.constant 0 : index
      %52 = vector.load %arg10[%c0_31, %c0_32] : memref<16x128xf32, #tpu.memory_space<vmem>>, vector<16x128xf32>
      tpu.vector_store %arg10[%c0_31, %c0_32], %51 {strides = array<i32>} : memref<16x128xf32, #tpu.memory_space<vmem>>, vector<16x128xf32>,
    } else {
    }
    %c0 = arith.constant 0 : index
    %c0_1 = arith.constant 0 : index
    %c0_2 = arith.constant 0 : index
    %3 = vector.load %arg2[%c0, %c0_1, %c0_2] : memref<1x4x256xf32, #tpu.memory_space<vmem>>, vector<1x4x256xf32>
    %4 = vector.shape_cast %3 : vector<1x4x256xf32> to vector<4x256xf32>
    %c0_3 = arith.constant 0 : index
    %c0_4 = arith.constant 0 : index
    %5 = vector.load %arg3[%c0_3, %c0_4] : memref<16x4xf32, #tpu.memory_space<vmem>>, vector<16x4xf32>
    %c0_5 = arith.constant 0 : index
    %c0_6 = arith.constant 0 : index
    %6 = vector.load %arg4[%c0_5, %c0_6] : memref<16x1xf32, #tpu.memory_space<vmem>>, vector<16x1xf32>
    %cst = arith.constant dense<0.000000e+00> : vector<16x256xf32>
    %7 = tpu.matmul %5, %4, %cst {dimension_numbers = #tpu.dot_dimension_numbers<[1], [0], [0], [1], [0, 0, 1, 1], [], []>} : vector<16x4xf32>, vector<4x256xf32>, vector<16x256xf32> -> vector<16x256xf32>
    %8 = vector.broadcast %6 : vector<16x1xf32> to vector<16x256xf32>
    %9 = arith.subf %7, %8 : vector<16x256xf32>
    %10 = tpu.iota {dimensions = array<i32: 0>} : vector<16x256xi32>
    %cst_7 = arith.constant dense<0xFF800000> : vector<256xf32>
    %11 = vector.multi_reduction <maximumf>, %9, %cst_7 [0] : vector<16x256xf32> to vector<256xf32>
    %12 = vector.shape_cast %11 : vector<256xf32> to vector<1x256xf32>
    %13 = vector.broadcast %12 : vector<1x256xf32> to vector<16x256xf32>
    %14 = arith.cmpf oeq, %9, %13 : vector<16x256xf32>
    %c16_i32 = arith.constant 16 : i32
    %15 = vector.broadcast %c16_i32 : i32 to vector<16x256xi32>
    %16 = arith.select %14, %10, %15 : vector<16x256xi1>, vector<16x256xi32>
    %cst_8 = arith.constant dense<2147483647> : vector<256xi32>
    %17 = vector.multi_reduction <minsi>, %16, %cst_8 [0] : vector<16x256xi32> to vector<256xi32>
    %18 = vector.shape_cast %17 : vector<256xi32> to vector<1x256xi32>
    %19 = vector.broadcast %18 : vector<1x256xi32> to vector<16x256xi32>
    %20 = arith.cmpi eq, %10, %19 : vector<16x256xi32>
    %21 = arith.extui %20 : vector<16x256xi1> to vector<16x256xi32>
    %22 = arith.sitofp %21 : vector<16x256xi32> to vector<16x256xf32>
    %cst_9 = arith.constant dense<0.000000e+00> : vector<4x256xf32>
    %23 = tpu.matmul %5, %22, %cst_9 {dimension_numbers = #tpu.dot_dimension_numbers<[0], [0], [1], [1], [0, 1, 1, 1], [], []>} : vector<16x4xf32>, vector<16x256xf32>, vector<4x256xf32> -> vector<4x256xf32>
    %c0_10 = arith.constant 0 : index
    %c0_11 = arith.constant 0 : index
    %c0_12 = arith.constant 0 : index
    %24 = vector.load %arg5[%c0_10, %c0_11, %c0_12] : memref<1x4x256xf32, #tpu.memory_space<vmem>>, vector<1x4x256xf32>
    %25 = vector.shape_cast %24 : vector<1x4x256xf32> to vector<4x256xf32>
    %26 = vector.shape_cast %23 : vector<4x256xf32> to vector<1x4x256xf32>
    tpu.vector_store %arg5[%c0_10, %c0_11, %c0_12], %26 {strides = array<i32>} : memref<1x4x256xf32, #tpu.memory_space<vmem>>, vector<1x4x256xf32>,
    %c0_13 = arith.constant 0 : index
    %c0_14 = arith.constant 0 : index
    %c0_15 = arith.constant 0 : index
    %27 = vector.load %arg6[%c0_13, %c0_14, %c0_15] : memref<1x1x256xi32, #tpu.memory_space<vmem>>, vector<1x1x256xi32>
    %28 = vector.shape_cast %27 : vector<1x1x256xi32> to vector<1x256xi32>
    %29 = vector.shape_cast %18 : vector<1x256xi32> to vector<1x1x256xi32>
    tpu.vector_store %arg6[%c0_13, %c0_14, %c0_15], %29 {strides = array<i32>} : memref<1x1x256xi32, #tpu.memory_space<vmem>>, vector<1x1x256xi32>,
    %30 = arith.subf %23, %4 : vector<4x256xf32>
    %31 = arith.mulf %30, %30 : vector<4x256xf32>
    %cst_16 = arith.constant dense<0.000000e+00> : vector<256xf32>
    %32 = vector.multi_reduction <add>, %31, %cst_16 [0] : vector<4x256xf32> to vector<256xf32>
    %33 = vector.shape_cast %32 : vector<256xf32> to vector<1x256xf32>
    %34 = vector.extract_strided_slice %33 {offsets = [0, 0], sizes = [1, 128], strides = [1, 1]} : vector<1x256xf32> to vector<1x128xf32>
    %35 = vector.extract_strided_slice %22 {offsets = [0, 0], sizes = [16, 128], strides = [1, 1]} : vector<16x256xf32> to vector<16x128xf32>
    %36 = vector.extract_strided_slice %33 {offsets = [0, 128], sizes = [1, 128], strides = [1, 1]} : vector<1x256xf32> to vector<1x128xf32>
    %37 = arith.addf %34, %36 : vector<1x128xf32>
    %38 = vector.extract_strided_slice %22 {offsets = [0, 128], sizes = [16, 128], strides = [1, 1]} : vector<16x256xf32> to vector<16x128xf32>
    %39 = arith.addf %35, %38 : vector<16x128xf32>
    %c0_17 = arith.constant 0 : index
    %c0_18 = arith.constant 0 : index
    %40 = vector.load %arg9[%c0_17, %c0_18] : memref<1x128xf32, #tpu.memory_space<vmem>>, vector<1x128xf32>
    %41 = arith.addf %40, %37 : vector<1x128xf32>
    %c0_19 = arith.constant 0 : index
    %c0_20 = arith.constant 0 : index
    %42 = vector.load %arg9[%c0_19, %c0_20] : memref<1x128xf32, #tpu.memory_space<vmem>>, vector<1x128xf32>
    tpu.vector_store %arg9[%c0_19, %c0_20], %41 {strides = array<i32>} : memref<1x128xf32, #tpu.memory_space<vmem>>, vector<1x128xf32>,
    %c0_21 = arith.constant 0 : index
    %c0_22 = arith.constant 0 : index
    %43 = vector.load %arg10[%c0_21, %c0_22] : memref<16x128xf32, #tpu.memory_space<vmem>>, vector<16x128xf32>
    %44 = arith.addf %43, %39 : vector<16x128xf32>
    %c0_23 = arith.constant 0 : index
    %c0_24 = arith.constant 0 : index
    %45 = vector.load %arg10[%c0_23, %c0_24] : memref<16x128xf32, #tpu.memory_space<vmem>>, vector<16x128xf32>
    tpu.vector_store %arg10[%c0_23, %c0_24], %44 {strides = array<i32>} : memref<16x128xf32, #tpu.memory_space<vmem>>, vector<16x128xf32>,
    %c0_i32_25 = arith.constant 0 : i32
    %46 = arith.cmpi eq, %arg1, %c0_i32_25 : i32
    %47 = arith.extui %46 : i1 to i32
    %c0_i32_26 = arith.constant 0 : i32
    %48 = arith.cmpi ne, %47, %c0_i32_26 : i32
    scf.if %48 {
      %c0_27 = arith.constant 0 : index
      %c0_28 = arith.constant 0 : index
      %49 = vector.load %arg9[%c0_27, %c0_28] : memref<1x128xf32, #tpu.memory_space<vmem>>, vector<1x128xf32>
      %cst_29 = arith.constant dense<0.000000e+00> : vector<1xf32>
      %50 = vector.multi_reduction <add>, %49, %cst_29 [1] : vector<1x128xf32> to vector<1xf32>
      %51 = vector.shape_cast %50 : vector<1xf32> to vector<1x1xf32>
      %c0_30 = arith.constant 0 : index
      %c0_31 = arith.constant 0 : index
      %c0_32 = arith.constant 0 : index
      %52 = vector.load %arg7[%c0_30, %c0_31, %c0_32] : memref<1x1x1xf32, #tpu.memory_space<vmem>>, vector<1x1x1xf32>
      %53 = vector.shape_cast %52 : vector<1x1x1xf32> to vector<1x1xf32>
      %54 = vector.shape_cast %51 : vector<1x1xf32> to vector<1x1x1xf32>
      tpu.vector_store %arg7[%c0_30, %c0_31, %c0_32], %54 {strides = array<i32>} : memref<1x1x1xf32, #tpu.memory_space<vmem>>, vector<1x1x1xf32>,
      %c0_33 = arith.constant 0 : index
      %c0_34 = arith.constant 0 : index
      %55 = vector.load %arg10[%c0_33, %c0_34] : memref<16x128xf32, #tpu.memory_space<vmem>>, vector<16x128xf32>
      %cst_35 = arith.constant dense<0.000000e+00> : vector<16xf32>
      %56 = vector.multi_reduction <add>, %55, %cst_35 [1] : vector<16x128xf32> to vector<16xf32>
      %57 = vector.shape_cast %56 : vector<16xf32> to vector<16x1xf32>
      %c0_36 = arith.constant 0 : index
      %c0_37 = arith.constant 0 : index
      %c0_38 = arith.constant 0 : index
      %58 = vector.load %arg8[%c0_36, %c0_37, %c0_38] : memref<1x16x1xf32, #tpu.memory_space<vmem>>, vector<1x16x1xf32>
      %59 = vector.shape_cast %58 : vector<1x16x1xf32> to vector<16x1xf32>
      %60 = vector.shape_cast %57 : vector<16x1xf32> to vector<1x16x1xf32>
      tpu.vector_store %arg8[%c0_36, %c0_37, %c0_38], %60 {strides = array<i32>} : memref<1x16x1xf32, #tpu.memory_space<vmem>>, vector<1x16x1xf32>,
    } else {
    }
    return
  }
  func.func @transform_0(%arg0: i32, %arg1: i32) -> (i32, i32, i32) {
    %c0_i32 = arith.constant 0 : i32
    %c0_i32_0 = arith.constant 0 : i32
    return %arg0, %c0_i32, %arg1 : i32, i32, i32
  }
  func.func @transform_1(%arg0: i32, %arg1: i32) -> (i32, i32) {
    %c0_i32 = arith.constant 0 : i32
    %c0_i32_0 = arith.constant 0 : i32
    %c0_i32_1 = arith.constant 0 : i32
    return %c0_i32, %c0_i32_0 : i32, i32
  }
  func.func @transform_2(%arg0: i32, %arg1: i32) -> (i32, i32) {
    %c0_i32 = arith.constant 0 : i32
    %c0_i32_0 = arith.constant 0 : i32
    %c0_i32_1 = arith.constant 0 : i32
    return %c0_i32, %c0_i32_0 : i32, i32
  }
  func.func @transform_3(%arg0: i32, %arg1: i32) -> (i32, i32, i32) {
    %c0_i32 = arith.constant 0 : i32
    %c0_i32_0 = arith.constant 0 : i32
    return %arg0, %c0_i32, %arg1 : i32, i32, i32
  }
  func.func @transform_4(%arg0: i32, %arg1: i32) -> (i32, i32, i32) {
    %c0_i32 = arith.constant 0 : i32
    %c0_i32_0 = arith.constant 0 : i32
    return %arg0, %c0_i32, %arg1 : i32, i32, i32
  }
  func.func @transform_5(%arg0: i32, %arg1: i32) -> (i32, i32, i32) {
    %c0_i32 = arith.constant 0 : i32
    %c0_i32_0 = arith.constant 0 : i32
    %c0_i32_1 = arith.constant 0 : i32
    return %arg0, %c0_i32, %c0_i32_0 : i32, i32, i32
  }
  func.func @transform_6(%arg0: i32, %arg1: i32) -> (i32, i32, i32) {
    %c0_i32 = arith.constant 0 : i32
    %c0_i32_0 = arith.constant 0 : i32
    %c0_i32_1 = arith.constant 0 : i32
    return %arg0, %c0_i32, %c0_i32_0 : i32, i32, i32
  }
}

</mosaic_0001>

<llo_original>
// kernel: forward.1
$region0: #{forward.1}
  #allocation0 [shape = 'u32[]', space=smem, size = 0x4, offset = 0x4, fixed_abs, tag = 'smem constant byte address 0x4 - core index']
  #allocation1 [shape = 'u32[144,128]{1,0:T(1,128)}', space=vmem, size = 0x12000, scoped, tag = 'internal scratch']
  #allocation2 [shape = 'f32[1,128]{1,0:T(1,128)}', space=vmem, size = 0x200, scoped, tag = 'scratch operand']
  #allocation3 [shape = 'f32[16,128]{1,0:T(8,128)}', space=vmem, size = 0x2000, scoped, tag = 'scratch operand']
  %s0 = inlined_call_operand.vmem [shape: f32[2,4,256], index: 0, kind: input, shape index: {}]
  %s1 = inlined_call_operand.vmem [shape: f32[16,4], index: 1, kind: input, shape index: {}]
  %s2 = inlined_call_operand.vmem [shape: f32[16,1], index: 2, kind: input, shape index: {}]
  %s3 = inlined_call_operand.vmem [shape: f32[2,4,256], index: 3, kind: output, shape index: {0}]
  %s4 = inlined_call_operand.vmem [shape: s32[2,1,256], index: 4, kind: output, shape index: {1}]
  %s5 = inlined_call_operand.vmem [shape: f32[2,1,1], index: 5, kind: output, shape index: {2}]
  %s6 = inlined_call_operand.vmem [shape: f32[2,16,1], index: 6, kind: output, shape index: {3}]
  %7 = xla_tuple %s3, %s4, %s5, %s6
  %s8 = sld [smem:[#allocation0]]
  $region77: #{forward.1} parent=0
    _
  %s10 = ssub.s32 1, %s8
  %s11 = scalar_select 0, %s10, %s8
  loop: start=0, step=1, limit=4
  $region2: #{forward.1} parent=0 // loop_pre_header
    _
  $region3: #{forward.1} parent=0 // loop_header
    %s13 = sphi 0, %s17
    %p14 = scmp.ge.s32.totalorder %s13, 4
    %s20 = sphi 0, %s32
    %s21 = sphi 0, %s28
    %s22 = sphi 0, %s20
    %s23 = sphi 0, %s21
    %s24 = sphi 0, %s22
    %s25 = sphi 0, %s23
    %s37 = sphi 0, %s39
    %s40 = sphi 0, %s37
    %s41 = sphi 0, %s40
    %s57 = sphi 0, %s41
    %s61 = sphi 0, %s61
    %s63 = sphi 0, %s61
    %s64 = sphi 0, %s63
    %s78 = sphi 0, %s64
    %s82 = sphi 0, %s82
    %s84 = sphi 0, %s82
    %s85 = sphi 0, %s84
    %s99 = sphi 0, %s85
    %s107 = sphi 0, %s109
    %s110 = sphi 0, %s107
    %s111 = sphi 0, %s110
    %s127 = sphi 0, %s111
    %s135 = sphi 0, %s137
    %s138 = sphi 0, %s135
    %s139 = sphi 0, %s138
    %s155 = sphi 0, %s139
    %s161 = sphi 0, %s163
    %s164 = sphi 0, %s161
    %s165 = sphi 0, %s164
    %s181 = sphi 0, %s165
    %s187 = sphi 0, %s189
    %s190 = sphi 0, %s187
    %s191 = sphi 0, %s190
    %s207 = sphi 0, %s191
  $region4: #{forward.1} parent=0 // loop_header_branch
    %16 = sbr.rel (%p14) target = $region8
  $region5: #{forward.1} parent=0 // loop_body
    %s18 = ssub.s32 %s13, 1
    %s19 = ssub.s32 %s13, 2
    %s26 = sadd.s32 1, %s21
    %p27 = scmp.ge.s32.totalorder %s26, 1
    %s28 = scalar_select %p27, 0, %s26
    %s29 = sadd.s32 1, %s20
    %s30 = scalar_select %p27, %s29, %s20
    %p31 = scmp.ge.s32.totalorder %s30, 2
    %s32 = scalar_select %p31, 0, %s30
    %s33 = ssub.s32 %s20, %s32
    %s34 = ssub.s32 %s21, %s28
    %s35 = sor.u32 %s33, %s34
    %p36 = scmp.eq.s32.totalorder %s35, 0
    %s38 = sadd.s32 %s37, 1
    %s39 = scalar_select %p36, %s37, %s38
    %p42 = pneg %p36
    %p43 = scmp.eq.s32.totalorder %s13, 1
    %p44 = por %p42, %p43
    %p45 = scmp.ne.s32.totalorder %s37, %s40
    %p46 = scmp.eq.s32.totalorder %s13, 0
    %p47 = por %p45, %p46
    %p48 = scmp.ne.s32.totalorder %s37, %s40
    %p49 = scmp.eq.s32.totalorder %s18, 1
    %p50 = por %p48, %p49
    %p51 = scmp.ne.s32.totalorder %s40, %s41
    %p52 = scmp.eq.s32.totalorder %s18, 0
    %p53 = por %p51, %p52
    %p54 = scmp.ne.s32.totalorder %s40, %s41
    %p55 = scmp.eq.s32.totalorder %s19, 1
    %p56 = por %p54, %p55
    %p58 = scmp.ne.s32.totalorder %s41, %s57
    %p59 = scmp.eq.s32.totalorder %s19, 0
    %p60 = por %p58, %p59
    %s62 = sadd.s32 %s61, 1
    %p65 = scmp.eq.s32.totalorder %s13, 1
    %p66 = scmp.ne.s32.totalorder %s61, %s63
    %p67 = scmp.eq.s32.totalorder %s13, 0
    %p68 = por %p66, %p67
    %p69 = scmp.ne.s32.totalorder %s61, %s63
    %p70 = scmp.eq.s32.totalorder %s18, 1
    %p71 = por %p69, %p70
    %p72 = scmp.ne.s32.totalorder %s63, %s64
    %p73 = scmp.eq.s32.totalorder %s18, 0
    %p74 = por %p72, %p73
    %p75 = scmp.ne.s32.totalorder %s63, %s64
    %p76 = scmp.eq.s32.totalorder %s19, 1
    %p77 = por %p75, %p76
    %p79 = scmp.ne.s32.totalorder %s64, %s78
    %p80 = scmp.eq.s32.totalorder %s19, 0
    %p81 = por %p79, %p80
    %s83 = sadd.s32 %s82, 1
    %p86 = scmp.eq.s32.totalorder %s13, 1
    %p87 = scmp.ne.s32.totalorder %s82, %s84
    %p88 = scmp.eq.s32.totalorder %s13, 0
    %p89 = por %p87, %p88
    %p90 = scmp.ne.s32.totalorder %s82, %s84
    %p91 = scmp.eq.s32.totalorder %s18, 1
    %p92 = por %p90, %p91
    %p93 = scmp.ne.s32.totalorder %s84, %s85
    %p94 = scmp.eq.s32.totalorder %s18, 0
    %p95 = por %p93, %p94
    %p96 = scmp.ne.s32.totalorder %s84, %s85
    %p97 = scmp.eq.s32.totalorder %s19, 1
    %p98 = por %p96, %p97
    %p100 = scmp.ne.s32.totalorder %s85, %s99
    %p101 = scmp.eq.s32.totalorder %s19, 0
    %p102 = por %p100, %p101
    %s103 = ssub.s32 %s20, %s32
    %s104 = ssub.s32 %s21, %s28
    %s105 = sor.u32 %s103, %s104
    %p106 = scmp.eq.s32.totalorder %s105, 0
    %s108 = sadd.s32 %s107, 1
    %s109 = scalar_select %p106, %s107, %s108
    %p112 = pneg %p106
    %p113 = scmp.eq.s32.totalorder %s13, 1
    %p114 = por %p112, %p113
    %p115 = scmp.ne.s32.totalorder %s107, %s110
    %p116 = scmp.eq.s32.totalorder %s13, 0
    %p117 = por %p115, %p116
    %p118 = scmp.ne.s32.totalorder %s107, %s110
    %p119 = scmp.eq.s32.totalorder %s18, 1
    %p120 = por %p118, %p119
    %p121 = scmp.ne.s32.totalorder %s110, %s111
    %p122 = scmp.eq.s32.totalorder %s18, 0
    %p123 = por %p121, %p122
    %p124 = scmp.ne.s32.totalorder %s110, %s111
    %p125 = scmp.eq.s32.totalorder %s19, 1
    %p126 = por %p124, %p125
    %p128 = scmp.ne.s32.totalorder %s111, %s127
    %p129 = scmp.eq.s32.totalorder %s19, 0
    %p130 = por %p128, %p129
    %s131 = ssub.s32 %s20, %s32
    %s132 = ssub.s32 %s21, %s28
    %s133 = sor.u32 %s131, %s132
    %p134 = scmp.eq.s32.totalorder %s133, 0
    %s136 = sadd.s32 %s135, 1
    %s137 = scalar_select %p134, %s135, %s136
    %p140 = pneg %p134
    %p141 = scmp.eq.s32.totalorder %s13, 1
    %p142 = por %p140, %p141
    %p143 = scmp.ne.s32.totalorder %s135, %s138
    %p144 = scmp.eq.s32.totalorder %s13, 0
    %p145 = por %p143, %p144
    %p146 = scmp.ne.s32.totalorder %s135, %s138
    %p147 = scmp.eq.s32.totalorder %s18, 1
    %p148 = por %p146, %p147
    %p149 = scmp.ne.s32.totalorder %s138, %s139
    %p150 = scmp.eq.s32.totalorder %s18, 0
    %p151 = por %p149, %p150
    %p152 = scmp.ne.s32.totalorder %s138, %s139
    %p153 = scmp.eq.s32.totalorder %s19, 1
    %p154 = por %p152, %p153
    %p156 = scmp.ne.s32.totalorder %s139, %s155
    %p157 = scmp.eq.s32.totalorder %s19, 0
    %p158 = por %p156, %p157
    %s159 = ssub.s32 %s20, %s32
    %p160 = scmp.eq.s32.totalorder %s159, 0
    %s162 = sadd.s32 %s161, 1
    %s163 = scalar_select %p160, %s161, %s162
    %p166 = pneg %p160
    %p167 = scmp.eq.s32.totalorder %s13, 1
    %p168 = por %p166, %p167
    %p169 = scmp.ne.s32.totalorder %s161, %s164
    %p170 = scmp.eq.s32.totalorder %s13, 0
    %p171 = por %p169, %p170
    %p172 = scmp.ne.s32.totalorder %s161, %s164
    %p173 = scmp.eq.s32.totalorder %s18, 1
    %p174 = por %p172, %p173
    %p175 = scmp.ne.s32.totalorder %s164, %s165
    %p176 = scmp.eq.s32.totalorder %s18, 0
    %p177 = por %p175, %p176
    %p178 = scmp.ne.s32.totalorder %s164, %s165
    %p179 = scmp.eq.s32.totalorder %s19, 1
    %p180 = por %p178, %p179
    %p182 = scmp.ne.s32.totalorder %s165, %s181
    %p183 = scmp.eq.s32.totalorder %s19, 0
    %p184 = por %p182, %p183
    %s185 = ssub.s32 %s20, %s32
    %p186 = scmp.eq.s32.totalorder %s185, 0
    %s188 = sadd.s32 %s187, 1
    %s189 = scalar_select %p186, %s187, %s188
    %p192 = pneg %p186
    %p193 = scmp.eq.s32.totalorder %s13, 1
    %p194 = por %p192, %p193
    %p195 = scmp.ne.s32.totalorder %s187, %s190
    %p196 = scmp.eq.s32.totalorder %s13, 0
    %p197 = por %p195, %p196
    %p198 = scmp.ne.s32.totalorder %s187, %s190
    %p199 = scmp.eq.s32.totalorder %s18, 1
    %p200 = por %p198, %p199
    %p201 = scmp.ne.s32.totalorder %s190, %s191
    %p202 = scmp.eq.s32.totalorder %s18, 0
    %p203 = por %p201, %p202
    %p204 = scmp.ne.s32.totalorder %s190, %s191
    %p205 = scmp.eq.s32.totalorder %s19, 1
    %p206 = por %p204, %p205
    %p208 = scmp.ne.s32.totalorder %s191, %s207
    %p209 = scmp.eq.s32.totalorder %s19, 0
    %p210 = por %p208, %p209
    %p211 = scmp.le.s32.totalorder 1, %s13
    %p212 = scmp.lt.s32.totalorder %s13, 3
    %p213 = pnand %p211, %p212
    %p214 = pneg %p213
    // Predicated region
    $region9: #{forward.1} parent=5 // pred_check
      _
    $region10: #{forward.1} parent=5 // pred_check_branch
      %216 = sbr.rel (%p213) target = $region12
    $region11: #{forward.1} parent=5 // pred_region
      %s217 = ssub.s32 %s13, 1
      // Predicated region
      $region13: #{forward.1} parent=11 // pred_check
        %p218 = pneg %p74
      $region14: #{forward.1} parent=11 // pred_check_branch
        %220 = sbr.rel (%p218) target = $region16
      $region15: #{forward.1} parent=11 // pred_region
        _
      $region16: #{forward.1} parent=11 // pred_fallthru
        _
      // Predicated region
      $region17: #{forward.1} parent=11 // pred_check
        %p221 = pneg %p95
      $region18: #{forward.1} parent=11 // pred_check_branch
        %223 = sbr.rel (%p221) target = $region20
      $region19: #{forward.1} parent=11 // pred_region
        _
      $region20: #{forward.1} parent=11 // pred_fallthru
        _
    $region12: #{forward.1} parent=5 // pred_fallthru
      _
    %p224 = scmp.lt.s32.totalorder %s13, 2
    // Predicated region
    $region21: #{forward.1} parent=5 // pred_check
      %p225 = pneg %p224
    $region22: #{forward.1} parent=5 // pred_check_branch
      %227 = sbr.rel (%p225) target = $region24
    $region23: #{forward.1} parent=5 // pred_region
      // Predicated region
      $region25: #{forward.1} parent=23 // pred_check
        %p228 = pneg %p47
      $region26: #{forward.1} parent=23 // pred_check_branch
        %230 = sbr.rel (%p228) target = $region28
      $region27: #{forward.1} parent=23 // pred_region
        %s231 = smul.u32 2, %s21
        %p232 = scmp.lt.s32.totalorder %s20, 1
        %s233 = scalar_select %p232, %s20, 1
        %p234 = scmp.lt.s32.totalorder %s231, 1
        %s235 = scalar_select %p234, %s231, 1
        %s236 = smul.addr %s233, 2
        %s237 = sadd.s32 %s235, %s236
        %s238 = smul.addr %s237, 4
        %s239 = scalar_lea.vmem %s0, %s238
        %s240 = smul.u32 2, %s21
      $region28: #{forward.1} parent=23 // pred_fallthru
        _
    $region24: #{forward.1} parent=5 // pred_fallthru
      _
    %p241 = scmp.le.s32.totalorder 1, %s13
    %p242 = scmp.lt.s32.totalorder %s13, 3
    %p243 = pnand %p241, %p242
    %p244 = pneg %p243
    // Predicated region
    $region29: #{forward.1} parent=5 // pred_check
      _
    $region30: #{forward.1} parent=5 // pred_check_branch
      %246 = sbr.rel (%p243) target = $region32
    $region31: #{forward.1} parent=5 // pred_region
      %s247 = ssub.s32 %s13, 1
      %s248 = smul.u32 2, %s23
      %p249 = scmp.lt.s32.totalorder %s22, 1
      %s250 = scalar_select %p249, %s22, 1
      %p251 = scmp.lt.s32.totalorder %s248, 1
      %s252 = scalar_select %p251, %s248, 1
      %s253 = smul.addr %s250, 2
      %s254 = sadd.s32 %s252, %s253
      %s255 = smul.addr %s254, 4
      %s256 = scalar_lea.vmem %s0, %s255
      %p257 = pneg %p53
      %p258 = pneg %p50
      %p259 = pneg %p74
      %p260 = pneg %p71
      %p261 = pneg %p95
      %p262 = pneg %p92
      %p263 = pneg %p123
      %p264 = pneg %p120
      %s265 = smul.u32 2, %s23
      %p266 = scmp.lt.s32.totalorder %s22, 1
      %s267 = scalar_select %p266, %s22, 1
      %p268 = scmp.lt.s32.totalorder %s265, 1
      %s269 = scalar_select %p268, %s265, 1
      %s270 = smul.addr %s267, 2
      %s271 = sadd.s32 %s269, %s270
      %s272 = smul.addr %s271, 4
      %s273 = scalar_lea.vmem %s3, %s272
      %p274 = pneg %p151
      %p275 = pneg %p148
      %s276 = smul.u32 2, %s23
      %p277 = scmp.lt.s32.totalorder %s22, 1
      %s278 = scalar_select %p277, %s22, 1
      %p279 = scmp.lt.s32.totalorder %s276, 1
      %s280 = scalar_select %p279, %s276, 1
      %s281 = smul.addr %s278, 2
      %s282 = sadd.s32 %s280, %s281
      %s283 = scalar_lea.vmem %s4, %s282
      %p284 = pneg %p177
      %p285 = pneg %p174
      %p286 = scmp.lt.s32.totalorder %s22, 1
      %s287 = scalar_select %p286, %s22, 1
      %s288 = scalar_lea.vmem %s5, %s287
      %p289 = pneg %p203
      %p290 = pneg %p200
      %p291 = scmp.lt.s32.totalorder %s22, 1
      %s292 = scalar_select %p291, %s22, 1
      %s293 = smul.addr %s292, 2
      %s294 = smul.addr %s293, 8
      %s295 = scalar_lea.vmem %s6, %s294
      %s296 = smul.u32 2, %s23
      %p297 = scmp.lt.s32.totalorder %s22, 1
      %s298 = scalar_select %p297, %s22, 1
      %p299 = scmp.lt.s32.totalorder %s296, 1
      %s300 = scalar_select %p299, %s296, 1
      %s301 = smul.addr %s298, 2
      %s302 = sadd.s32 %s300, %s301
      %s303 = smul.addr %s302, 4
      %s304 = scalar_lea.vmem %s0, %s303
      %s305 = smul.u32 2, %s23
      %s306 = smul.u32 2, %s23
      %p307 = scmp.lt.s32.totalorder %s22, 1
      %s308 = scalar_select %p307, %s22, 1
      %p309 = scmp.lt.s32.totalorder %s306, 1
      %s310 = scalar_select %p309, %s306, 1
      %s311 = smul.addr %s308, 2
      %s312 = sadd.s32 %s310, %s311
      %s313 = smul.addr %s312, 4
      %s314 = scalar_lea.vmem %s3, %s313
      %s315 = smul.u32 2, %s23
      %s316 = smul.u32 2, %s23
      %p317 = scmp.lt.s32.totalorder %s22, 1
      %s318 = scalar_select %p317, %s22, 1
      %p319 = scmp.lt.s32.totalorder %s316, 1
      %s320 = scalar_select %p319, %s316, 1
      %s321 = smul.addr %s318, 2
      %s322 = sadd.s32 %s320, %s321
      %s323 = scalar_lea.vmem %s4, %s322
      %s324 = smul.u32 2, %s23
      %p325 = scmp.lt.s32.totalorder %s22, 1
      %s326 = scalar_select %p325, %s22, 1
      %s327 = scalar_lea.vmem %s5, %s326
      %p328 = scmp.lt.s32.totalorder %s22, 1
      %s329 = scalar_select %p328, %s22, 1
      %s330 = smul.addr %s329, 2
      %s331 = smul.addr %s330, 8
      %s332 = scalar_lea.vmem %s6, %s331
      %p333 = scmp.eq.s32.totalorder %s23, 0
      // Predicated region
      $region33: #{forward.1} parent=31 // pred_check
        %p334 = pneg %p333
      $region34: #{forward.1} parent=31 // pred_check_branch
        %336 = sbr.rel (%p334) target = $region36
      $region35: #{forward.1} parent=31 // pred_region
        %337 = vst [vmem:[#allocation2] sm:$0x1] 0.0
        %338 = vst [vmem:[#allocation3] sm:$0xff] 0.0
        %339 = vst [vmem:[#allocation3 + $0x8] sm:$0xff] 0.0
      $region36: #{forward.1} parent=31 // pred_fallthru
        _
      %v340 = vld [vmem:[%s304] sm:$0xff]
      %v341 = vld [vmem:[%s1] sm:$0xff]
      %v342 = vld [vmem:[%s1 + $0x8] sm:$0xff]
      %v343 = vld [vmem:[%s2] sm:$0xff]
      %v344 = vld [vmem:[%s2 + $0x8] sm:$0xff]
      %v346 = vcombine.high %v340, %v340
      %vm347 = vcmask 31744
      %v349 = vsel %vm347, %v341, 0
      %v352 = vsel %vm347, %v342, 0
      %vm354 = vcmask 1043456
      %v355 = vsel %vm354, %v340, 0
      %v357 = vsel %vm354, %v346, 0
      %359 = vmatprep.subr.mxu0 %v357
      %360 = vmatpush1.msra.mxu0 %v355
      %361 = vmatprep.subr.mxu0 0.0
      %362 = vmatpush1.msra.mxu0 0.0
      %363 = vmatprep.subr.mxu0 0.0
      %364 = vmatpush1.msra.mxu0 0.0
      %365 = vmatprep.subr.mxu0 0.0
      %366 = vmatpush1.msra.mxu0 0.0
      %367 = vmatprep.subr.mxu0 0.0
      %368 = vmatpush1.msra.mxu0 0.0
      %369 = vmatprep.subr.mxu0 0.0
      %370 = vmatpush1.msra.mxu0 0.0
      %371 = vmatprep.subr.mxu0 0.0
      %372 = vmatpush1.msra.mxu0 0.0
      %373 = vmatprep.subr.mxu0 0.0
      %374 = vmatpush1.msra.mxu0 0.0
      %375 = vmatprep.subr.mxu0 0.0
      %376 = vmatpush1.msra.mxu0 0.0
      %377 = vmatprep.subr.mxu0 0.0
      %378 = vmatpush1.msra.mxu0 0.0
      %379 = vmatprep.subr.mxu0 0.0
      %380 = vmatpush1.msra.mxu0 0.0
      %381 = vmatprep.subr.mxu0 0.0
      %382 = vmatpush1.msra.mxu0 0.0
      %383 = vmatprep.subr.mxu0 0.0
      %384 = vmatpush1.msra.mxu0 0.0
      %385 = vmatprep.subr.mxu0 0.0
      %386 = vmatpush1.msra.mxu0 0.0
      %387 = vmatprep.subr.mxu0 0.0
      %388 = vmatpush1.msra.mxu0 0.0
      %389 = vmatprep.subr.mxu0 0.0
      %390 = vmatpush1.msra.mxu0 0.0
      %391 = vmatprep.subr.mxu0 0.0
      %392 = vmatpush1.msra.mxu0 0.0
      %393 = vmatprep.subr.mxu0 0.0
      %394 = vmatpush1.msra.mxu0 0.0
      %395 = vmatprep.subr.mxu0 0.0
      %396 = vmatpush1.msra.mxu0 0.0
      %397 = vmatprep.subr.mxu0 0.0
      %398 = vmatpush1.msra.mxu0 0.0
      %399 = vmatprep.subr.mxu0 0.0
      %400 = vmatpush1.msra.mxu0 0.0
      %401 = vmatprep.subr.mxu0 0.0
      %402 = vmatpush1.msra.mxu0 0.0
      %403 = vmatprep.subr.mxu0 0.0
      %404 = vmatpush1.msra.mxu0 0.0
      %405 = vmatprep.subr.mxu0 0.0
      %406 = vmatpush1.msra.mxu0 0.0
      %407 = vmatprep.subr.mxu0 0.0
      %408 = vmatpush1.msra.mxu0 0.0
      %409 = vmatprep.subr.mxu0 0.0
      %410 = vmatpush1.msra.mxu0 0.0
      %411 = vmatprep.subr.mxu0 0.0
      %412 = vmatpush1.msra.mxu0 0.0
      %413 = vmatprep.subr.mxu0 0.0
      %414 = vmatpush1.msra.mxu0 0.0
      %415 = vmatprep.subr.mxu0 0.0
      %416 = vmatpush1.msra.mxu0 0.0
      %417 = vmatprep.subr.mxu0 0.0
      %418 = vmatpush1.msra.mxu0 0.0
      %419 = vmatprep.subr.mxu0 0.0
      %420 = vmatpush1.msra.mxu0 0.0
      %421 = vmatprep.subr.mxu0 0.0
      %422 = vmatpush1.msra.mxu0 0.0
      %423 = vmatprep.mubr.f32.mxu0 0.0
      %424 = vmatmul.mubr.f32.gmra.mrb[0].mxu0 %v349
      %v425 = vpop.f32.mrb[0].mxu0
      %v426 = vadd.f32 0.0, %v425
      %v427 = vpop.f32.mrb[0].mxu0
      %v428 = vadd.f32 0.0, %v427
      %429 = vmatprep.mubr.f32.mxu0 0.0
      %430 = vmatmul.mubr.f32.gmra.mrb[0].mxu0 %v352
      %v431 = vpop.f32.mrb[0].mxu0
      %v432 = vadd.f32 0.0, %v431
      %v433 = vpop.f32.mrb[0].mxu0
      %v434 = vadd.f32 0.0, %v433
      %435 = vdwg.mxu0
      %437 = vset.pattern.permute.xlu0 0
      %438 = vperm.xlu0 %437, %v343
      %v439 = vpop.permute.xlu0 %438
      %442 = vset.pattern.permute.xlu0 0
      %443 = vperm.xlu0 %442, %v344
      %v444 = vpop.permute.xlu0 %443
      %v446 = vsub.f32 %v426, %v439
      %v447 = vsub.f32 %v428, %v439
      %v448 = vsub.f32 %v432, %v444
      %v449 = vsub.f32 %v434, %v444
      %v450 = vlaneseq
      %v451 = vshrl.u32 %v450, 7
      %v452 = vadd.s32 %v451, 8
      %v453 = vmax.f32 %v446, %v448
      %v454 = vrot.slane %v453, 4
      %v455 = vmax.f32 %v453, %v454
      %v456 = vrot.slane %v455, 2
      %v457 = vmax.f32 %v455, %v456
      %v458 = vrot.slane %v457, 1
      %v459 = vmax.f32 %v457, %v458
      %v460 = vmax.f32 %v447, %v449
      %v461 = vrot.slane %v460, 4
      %v462 = vmax.f32 %v460, %v461
      %v463 = vrot.slane %v462, 2
      %v464 = vmax.f32 %v462, %v463
      %v465 = vrot.slane %v464, 1
      %v466 = vmax.f32 %v464, %v465
      %vm467 = vcmp.eq.f32.partialorder %v446, %v459
      %vm468 = vcmp.eq.f32.partialorder %v447, %v466
      %vm469 = vcmp.eq.f32.partialorder %v448, %v459
      %vm470 = vcmp.eq.f32.partialorder %v449, %v466
      %v471 = vsel %vm467, %v451, 16
      %v472 = vsel %vm468, %v451, 16
      %v473 = vsel %vm469, %v452, 16
      %v474 = vsel %vm470, %v452, 16
      %vm475 = vcmp.lt.s32.totalorder %v471, %v473
      %v476 = vsel %vm475, %v471, %v473
      %v477 = vrot.slane %v476, 4
      %vm478 = vcmp.lt.s32.totalorder %v476, %v477
      %v479 = vsel %vm478, %v476, %v477
      %v480 = vrot.slane %v479, 2
      %vm481 = vcmp.lt.s32.totalorder %v479, %v480
      %v482 = vsel %vm481, %v479, %v480
      %v483 = vrot.slane %v482, 1
      %vm484 = vcmp.lt.s32.totalorder %v482, %v483
      %v485 = vsel %vm484, %v482, %v483
      %vm486 = vcmp.lt.s32.totalorder %v472, %v474
      %v487 = vsel %vm486, %v472, %v474
      %v488 = vrot.slane %v487, 4
      %vm489 = vcmp.lt.s32.totalorder %v487, %v488
      %v490 = vsel %vm489, %v487, %v488
      %v491 = vrot.slane %v490, 2
      %vm492 = vcmp.lt.s32.totalorder %v490, %v491
      %v493 = vsel %vm492, %v490, %v491
      %v494 = vrot.slane %v493, 1
      %vm495 = vcmp.lt.s32.totalorder %v493, %v494
      %v496 = vsel %vm495, %v493, %v494
      %vm497 = vcmp.eq.s32.totalorder %v451, %v485
      %vm498 = vcmp.eq.s32.totalorder %v451, %v496
      %vm499 = vcmp.eq.s32.totalorder %v452, %v485
      %vm500 = vcmp.eq.s32.totalorder %v452, %v496
      %v501 = vsel %vm497, 1, 0
      %v502 = vsel %vm498, 1, 0
      %v503 = vsel %vm499, 1, 0
      %v504 = vsel %vm500, 1, 0
      %v505 = vcvt.s32.f32 %v501
      %v506 = vcvt.s32.f32 %v502
      %v507 = vcvt.s32.f32 %v503
      %v508 = vcvt.s32.f32 %v504
      %509 = vxpose.xlu0.b32.start [1/16] %v341, 128
      %510 = vxpose.xlu0.b32.cont [2/16] %v342, 128
      %511 = vxpose.xlu0.b32.cont [3/16] 0.0, 128
      %512 = vxpose.xlu0.b32.cont [4/16] 0.0, 128
      %513 = vxpose.xlu0.b32.cont [5/16] 0.0, 128
      %514 = vxpose.xlu0.b32.cont [6/16] 0.0, 128
      %515 = vxpose.xlu0.b32.cont [7/16] 0.0, 128
      %516 = vxpose.xlu0.b32.cont [8/16] 0.0, 128
      %517 = vxpose.xlu0.b32.cont [9/16] 0.0, 128
      %518 = vxpose.xlu0.b32.cont [10/16] 0.0, 128
      %519 = vxpose.xlu0.b32.cont [11/16] 0.0, 128
      %520 = vxpose.xlu0.b32.cont [12/16] 0.0, 128
      %521 = vxpose.xlu0.b32.cont [13/16] 0.0, 128
      %522 = vxpose.xlu0.b32.cont [14/16] 0.0, 128
      %523 = vxpose.xlu0.b32.cont [15/16] 0.0, 128
      %524 = vxpose.xlu0.b32.end [16/16] 0.0, 128
      %v525 = vpop.trf.xlu0
      %v526 = vpop.trf.xlu0
      %v527 = vpop.trf.xlu0
      %v528 = vpop.trf.xlu0
      %v529 = vpop.trf.xlu0
      %v530 = vpop.trf.xlu0
      %v531 = vpop.trf.xlu0
      %v532 = vpop.trf.xlu0
      %v533 = vpop.trf.xlu0
      %v534 = vpop.trf.xlu0
      %v535 = vpop.trf.xlu0
      %v536 = vpop.trf.xlu0
      %v537 = vpop.trf.xlu0
      %v538 = vpop.trf.xlu0
      %v539 = vpop.trf.xlu0
      %v540 = vpop.trf.xlu0
      %vm541 = vcmask 130048
      %v543 = vsel %vm541, %v525, 0
      %545 = vmatprep.subr.mxu0 %v506
      %546 = vmatpush1.msra.mxu0 %v505
      %547 = vmatprep.subr.mxu0 %v508
      %548 = vmatpush1.msra.mxu0 %v507
      %549 = vmatprep.subr.mxu0 0.0
      %550 = vmatpush1.msra.mxu0 0.0
      %551 = vmatprep.subr.mxu0 0.0
      %552 = vmatpush1.msra.mxu0 0.0
      %553 = vmatprep.subr.mxu0 0.0
      %554 = vmatpush1.msra.mxu0 0.0
      %555 = vmatprep.subr.mxu0 0.0
      %556 = vmatpush1.msra.mxu0 0.0
      %557 = vmatprep.subr.mxu0 0.0
      %558 = vmatpush1.msra.mxu0 0.0
      %559 = vmatprep.subr.mxu0 0.0
      %560 = vmatpush1.msra.mxu0 0.0
      %561 = vmatprep.subr.mxu0 0.0
      %562 = vmatpush1.msra.mxu0 0.0
      %563 = vmatprep.subr.mxu0 0.0
      %564 = vmatpush1.msra.mxu0 0.0
      %565 = vmatprep.subr.mxu0 0.0
      %566 = vmatpush1.msra.mxu0 0.0
      %567 = vmatprep.subr.mxu0 0.0
      %568 = vmatpush1.msra.mxu0 0.0
      %569 = vmatprep.subr.mxu0 0.0
      %570 = vmatpush1.msra.mxu0 0.0
      %571 = vmatprep.subr.mxu0 0.0
      %572 = vmatpush1.msra.mxu0 0.0
      %573 = vmatprep.subr.mxu0 0.0
      %574 = vmatpush1.msra.mxu0 0.0
      %575 = vmatprep.subr.mxu0 0.0
      %576 = vmatpush1.msra.mxu0 0.0
      %577 = vmatprep.subr.mxu0 0.0
      %578 = vmatpush1.msra.mxu0 0.0
      %579 = vmatprep.subr.mxu0 0.0
      %580 = vmatpush1.msra.mxu0 0.0
      %581 = vmatprep.subr.mxu0 0.0
      %582 = vmatpush1.msra.mxu0 0.0
      %583 = vmatprep.subr.mxu0 0.0
      %584 = vmatpush1.msra.mxu0 0.0
      %585 = vmatprep.subr.mxu0 0.0
      %586 = vmatpush1.msra.mxu0 0.0
      %587 = vmatprep.subr.mxu0 0.0
      %588 = vmatpush1.msra.mxu0 0.0
      %589 = vmatprep.subr.mxu0 0.0
      %590 = vmatpush1.msra.mxu0 0.0
      %591 = vmatprep.subr.mxu0 0.0
      %592 = vmatpush1.msra.mxu0 0.0
      %593 = vmatprep.subr.mxu0 0.0
      %594 = vmatpush1.msra.mxu0 0.0
      %595 = vmatprep.subr.mxu0 0.0
      %596 = vmatpush1.msra.mxu0 0.0
      %597 = vmatprep.subr.mxu0 0.0
      %598 = vmatpush1.msra.mxu0 0.0
      %599 = vmatprep.subr.mxu0 0.0
      %600 = vmatpush1.msra.mxu0 0.0
      %601 = vmatprep.subr.mxu0 0.0
      %602 = vmatpush1.msra.mxu0 0.0
      %603 = vmatprep.subr.mxu0 0.0
      %604 = vmatpush1.msra.mxu0 0.0
      %605 = vmatprep.subr.mxu0 0.0
      %606 = vmatpush1.msra.mxu0 0.0
      %607 = vmatprep.subr.mxu0 0.0
      %608 = vmatpush1.msra.mxu0 0.0
      %609 = vmatprep.mubr.f32.mxu0 0.0
      %610 = vmatmul.mubr.f32.gmra.mrb[0].mxu0 %v543
      %v611 = vpop.f32.mrb[0].mxu0
      %v612 = vadd.f32 0.0, %v611
      %v613 = vpop.f32.mrb[0].mxu0
      %v614 = vadd.f32 0.0, %v613
      %615 = vdwg.mxu0
      %v618 = vcombine.low %v612, %v614
      %620 = vst [vmem:[%s314] sm:$0xff] %v618
      %v621 = vcombine.low %v485, %v496
      %v623 = vunpack.c.l.s4 1966171168
      %v624 = vunpack.c.0.s8 %v623
      %v625 = vlaneseq
      %v626 = vshrl.u32 %v625, 7
      %v627 = vsub.s32 %v624, %v626
      %v628 = vrot.slane %v621, %v627
      %v630 = vunpack.c.l.s4 1966171168
      %v631 = vunpack.c.0.s8 %v630
      %v632 = vlaneseq
      %v633 = vshrl.u32 %v632, 7
      %v634 = vsub.s32 %v631, %v633
      %v635 = vrot.slane %v628, %v634
      %v636 = vlaneseq
      %vm637 = vcmp.ge.s32.totalorder %v636, 0
      %vm638 = vcmp.lt.s32.totalorder %v636, 256
      %vm639 = vmand %vm637, %vm638
      %640 = vst.msk [vmem:[%s323] sm:$0x3] %vm639, %v635
      %v642 = vsub.f32 %v612, %v340
      %v643 = vsub.f32 %v614, %v346
      %v644 = vmul.f32 %v642, %v642
      %v645 = vmul.f32 %v643, %v643
      %v646 = vsel %vm354, %v644, 0.0
      %v647 = vrot.slane %v646, 4
      %v648 = vadd.f32 %v646, %v647
      %v649 = vrot.slane %v648, 2
      %v650 = vadd.f32 %v648, %v649
      %v651 = vrot.slane %v650, 1
      %v652 = vadd.f32 %v650, %v651
      %v653 = vsel %vm354, %v645, 0.0
      %v654 = vrot.slane %v653, 4
      %v655 = vadd.f32 %v653, %v654
      %v656 = vrot.slane %v655, 2
      %v657 = vadd.f32 %v655, %v656
      %v658 = vrot.slane %v657, 1
      %v659 = vadd.f32 %v657, %v658
      %v660 = vadd.f32 %v652, %v659
      %v661 = vadd.f32 %v505, %v506
      %v662 = vadd.f32 %v507, %v508
      %v663 = vld [vmem:[#allocation2] sm:$0x1]
      %v664 = vadd.f32 %v663, %v660
      %665 = vst [vmem:[#allocation2] sm:$0x1] %v664
      %v666 = vld [vmem:[#allocation3] sm:$0xff]
      %v667 = vld [vmem:[#allocation3 + $0x8] sm:$0xff]
      %v668 = vadd.f32 %v666, %v661
      %v669 = vadd.f32 %v667, %v662
      %670 = vst [vmem:[#allocation3] sm:$0xff] %v668
      %671 = vst [vmem:[#allocation3 + $0x8] sm:$0xff] %v669
      // Predicated region
      $region37: #{forward.1} parent=31 // pred_check
        %p672 = pneg %p333
      $region38: #{forward.1} parent=31 // pred_check_branch
        %674 = sbr.rel (%p672) target = $region40
      $region39: #{forward.1} parent=31 // pred_region
        %v675 = vld [vmem:[#allocation2] sm:$0x1]
        %vm676 = vcmask 1040384
        %v677 = vsel %vm676, %v675, 0.0
        %678 = vadd.xlane.f32.xlu0 %v677
        %v679 = vpop.xlane.xlu0 %678
        %vm680 = vcmask 0
        %681 = vst.msk [vmem:[%s327] sm:$0x1] %vm680, %v679
        %v682 = vld [vmem:[#allocation3] sm:$0xff]
        %v683 = vld [vmem:[#allocation3 + $0x8] sm:$0xff]
        %684 = vadd.xlane.f32.xlu0 %v682
        %v685 = vpop.xlane.xlu0 %684
        %686 = vadd.xlane.f32.xlu0 %v683
        %v687 = vpop.xlane.xlu0 %686
        %vm688 = vcmask 7168
        %689 = vst.msk [vmem:[%s332] sm:$0xff] %vm688, %v685
        %690 = vst.msk [vmem:[%s332 + $0x8] sm:$0xff] %vm688, %v687
      $region40: #{forward.1} parent=31 // pred_fallthru
        _
      %s691 = smul.u32 2, %s23
      %p692 = scmp.lt.s32.totalorder %s22, 1
      %s693 = scalar_select %p692, %s22, 1
      %p694 = scmp.lt.s32.totalorder %s691, 1
      %s695 = scalar_select %p694, %s691, 1
      %s696 = smul.addr %s693, 2
      %s697 = sadd.s32 %s695, %s696
      %s698 = smul.addr %s697, 4
      %s699 = scalar_lea.vmem %s3, %s698
      %s700 = smul.u32 2, %s23
      %p701 = scmp.lt.s32.totalorder %s22, 1
      %s702 = scalar_select %p701, %s22, 1
      %p703 = scmp.lt.s32.totalorder %s700, 1
      %s704 = scalar_select %p703, %s700, 1
      %s705 = smul.addr %s702, 2
      %s706 = sadd.s32 %s704, %s705
      %s707 = scalar_lea.vmem %s4, %s706
      %p708 = scmp.lt.s32.totalorder %s22, 1
      %s709 = scalar_select %p708, %s22, 1
      %s710 = scalar_lea.vmem %s5, %s709
      %p711 = scmp.lt.s32.totalorder %s22, 1
      %s712 = scalar_select %p711, %s22, 1
      %s713 = smul.addr %s712, 2
      %s714 = smul.addr %s713, 8
      %s715 = scalar_lea.vmem %s6, %s714
      // Predicated region
      $region41: #{forward.1} parent=31 // pred_check
        %p716 = pneg %p120
      $region42: #{forward.1} parent=31 // pred_check_branch
        %718 = sbr.rel (%p716) target = $region44
      $region43: #{forward.1} parent=31 // pred_region
        %s719 = smul.u32 2, %s23
      $region44: #{forward.1} parent=31 // pred_fallthru
        _
      // Predicated region
      $region45: #{forward.1} parent=31 // pred_check
        %p720 = pneg %p148
      $region46: #{forward.1} parent=31 // pred_check_branch
        %722 = sbr.rel (%p720) target = $region48
      $region47: #{forward.1} parent=31 // pred_region
        %s723 = smul.u32 2, %s23
      $region48: #{forward.1} parent=31 // pred_fallthru
        _
      // Predicated region
      $region49: #{forward.1} parent=31 // pred_check
        %p724 = pneg %p174
      $region50: #{forward.1} parent=31 // pred_check_branch
        %726 = sbr.rel (%p724) target = $region52
      $region51: #{forward.1} parent=31 // pred_region
        _
      $region52: #{forward.1} parent=31 // pred_fallthru
        _
      // Predicated region
      $region53: #{forward.1} parent=31 // pred_check
        %p727 = pneg %p200
      $region54: #{forward.1} parent=31 // pred_check_branch
        %729 = sbr.rel (%p727) target = $region56
      $region55: #{forward.1} parent=31 // pred_region
        _
      $region56: #{forward.1} parent=31 // pred_fallthru
        _
    $region32: #{forward.1} parent=5 // pred_fallthru
      _
    %p730 = scmp.le.s32.totalorder 2, %s13
    // Predicated region
    $region57: #{forward.1} parent=5 // pred_check
      %p731 = pneg %p730
    $region58: #{forward.1} parent=5 // pred_check_branch
      %733 = sbr.rel (%p731) target = $region60
    $region59: #{forward.1} parent=5 // pred_region
      %s734 = ssub.s32 %s13, 2
      // Predicated region
      $region61: #{forward.1} parent=59 // pred_check
        %p735 = pneg %p126
      $region62: #{forward.1} parent=59 // pred_check_branch
        %737 = sbr.rel (%p735) target = $region64
      $region63: #{forward.1} parent=59 // pred_region
        %s738 = smul.u32 2, %s25
        %p739 = scmp.lt.s32.totalorder %s24, 1
        %s740 = scalar_select %p739, %s24, 1
        %p741 = scmp.lt.s32.totalorder %s738, 1
        %s742 = scalar_select %p741, %s738, 1
        %s743 = smul.addr %s740, 2
        %s744 = sadd.s32 %s742, %s743
        %s745 = smul.addr %s744, 4
        %s746 = scalar_lea.vmem %s3, %s745
      $region64: #{forward.1} parent=59 // pred_fallthru
        _
      // Predicated region
      $region65: #{forward.1} parent=59 // pred_check
        %p747 = pneg %p154
      $region66: #{forward.1} parent=59 // pred_check_branch
        %749 = sbr.rel (%p747) target = $region68
      $region67: #{forward.1} parent=59 // pred_region
        %s750 = smul.u32 2, %s25
        %p751 = scmp.lt.s32.totalorder %s24, 1
        %s752 = scalar_select %p751, %s24, 1
        %p753 = scmp.lt.s32.totalorder %s750, 1
        %s754 = scalar_select %p753, %s750, 1
        %s755 = smul.addr %s752, 2
        %s756 = sadd.s32 %s754, %s755
        %s757 = scalar_lea.vmem %s4, %s756
      $region68: #{forward.1} parent=59 // pred_fallthru
        _
      // Predicated region
      $region69: #{forward.1} parent=59 // pred_check
        %p758 = pneg %p180
      $region70: #{forward.1} parent=59 // pred_check_branch
        %760 = sbr.rel (%p758) target = $region72
      $region71: #{forward.1} parent=59 // pred_region
        %p761 = scmp.lt.s32.totalorder %s24, 1
        %s762 = scalar_select %p761, %s24, 1
        %s763 = scalar_lea.vmem %s5, %s762
      $region72: #{forward.1} parent=59 // pred_fallthru
        _
      // Predicated region
      $region73: #{forward.1} parent=59 // pred_check
        %p764 = pneg %p206
      $region74: #{forward.1} parent=59 // pred_check_branch
        %766 = sbr.rel (%p764) target = $region76
      $region75: #{forward.1} parent=59 // pred_region
        %p767 = scmp.lt.s32.totalorder %s24, 1
        %s768 = scalar_select %p767, %s24, 1
        %s769 = smul.addr %s768, 2
        %s770 = smul.addr %s769, 8
        %s771 = scalar_lea.vmem %s6, %s770
      $region76: #{forward.1} parent=59 // pred_fallthru
        _
    $region60: #{forward.1} parent=5 // pred_fallthru
      _
  $region6: #{forward.1} parent=0 // loop_footer
    %s17 = sadd.s32 1, %s13
  $region7: #{forward.1} parent=0 // loop_footer_branch
    %12 = sbr.rel target = $region3
  $region8: #{forward.1} parent=0 // loop_exit
    _

</llo_original>
